<compile_context>
chip_gen: v5e
topology: v5e:2x2
jax: 0.10.0
libtpu: 0.0.40
codegen_flags: <defaults>
</compile_context>

<pallas_src>
import functools
import numpy as np
import jax
import jax.numpy as jnp
from jax import lax
from jax.experimental import pallas as pl
from jax.experimental.pallas import tpu as pltpu


def _round_up(v: int, m: int) -> int:
    return (v + m - 1) // m * m


def _sgc_fused_kernel(idx_ref, val_ref, x_ref, out_ref, xbuf_ref, *,
                      tm, max_nnz, n_pad):
    """Grid step (k, i): rows [i*tm, (i+1)*tm) of propagation hop k.

    idx_ref : VMEM (tm, max_nnz) int32   ELL column indices for this row block
    val_ref : VMEM (tm, max_nnz) float32 ELL edge values     for this row block
    x_ref   : VMEM (n_pad, Fp)   input features, resident (constant block)
    out_ref : VMEM (n_pad, Fp)   output, resident; written on the last hop
    xbuf_ref: VMEM (2*n_pad, Fp) f32 ping-pong feature buffer across hops
    """
    k = pl.program_id(0)
    i = pl.program_id(1)
    f_pad = x_ref.shape[1]

    src_off = pl.multiple_of(lax.rem(k, 2) * n_pad, 8)
    dst_off = pl.multiple_of(lax.rem(k + 1, 2) * n_pad, 8)
    row0 = pl.multiple_of(i * tm, 8)

    # Stage the hop-0 input features into ping-pong slot 0 exactly once.
    @pl.when(jnp.logical_and(k == 0, i == 0))
    def _():
        xbuf_ref[pl.ds(0, n_pad), :] = x_ref[...].astype(jnp.float32)

    # Densify this (tm, n_pad) adjacency row block from its ELL slots.
    # Padded slots carry (idx=0, val=0.0) and therefore contribute nothing.
    idx_blk = idx_ref[...]                               # (tm, max_nnz) int32
    val_blk = val_ref[...].astype(jnp.float32)           # (tm, max_nnz) f32
    col_ids = lax.broadcasted_iota(jnp.int32, (tm, n_pad), 1)
    a_blk = jnp.zeros((tm, n_pad), jnp.float32)
    for j in range(max_nnz):                             # static unroll (small)
        cj = idx_blk[:, j:j + 1]                         # (tm, 1)
        vj = val_blk[:, j:j + 1]                         # (tm, 1)
        a_blk = a_blk + jnp.where(col_ids == cj, vj, jnp.float32(0.0))

    # Current-hop source features (full resident block) and one MXU matmul.
    x_src = xbuf_ref[pl.ds(src_off, n_pad), :]           # (n_pad, Fp) f32
    acc = jnp.dot(a_blk, x_src, preferred_element_type=jnp.float32)  # (tm, Fp)

    # Write this row block of the next hop's features.
    xbuf_ref[pl.ds(dst_off + row0, tm), :] = acc

    @pl.when(k == pl.num_programs(0) - 1)
    def _():
        out_ref[pl.ds(row0, tm), :] = acc.astype(out_ref.dtype)


def sgc_propagate_pallas(ell_idx, ell_val, x, k_hops, *, tm=128):
    """Apply x <- A @ x for `k_hops` hops in a single fused Pallas kernel.

    ell_idx : (N, max_nnz) int   padded-ELL column indices (pad with 0)
    ell_val : (N, max_nnz) float padded-ELL edge values    (pad with 0.0)
    x       : (N, F) node features
    """
    if k_hops is None or k_hops <= 0:        # range(K<=0) is empty, identity
        return x

    n, f = x.shape
    max_nnz = max(int(ell_idx.shape[1]), 1)
    n_pad = _round_up(max(n, tm), tm)
    f_pad = _round_up(max(f, 128), 128)      # lane-dense feature dimension

    xp = jnp.zeros((n_pad, f_pad), jnp.float32).at[:n, :f].set(
        x.astype(jnp.float32))
    idxp = jnp.zeros((n_pad, max_nnz), jnp.int32).at[:n, :].set(
        jnp.asarray(ell_idx, jnp.int32))
    valp = jnp.zeros((n_pad, max_nnz), jnp.float32).at[:n, :].set(
        jnp.asarray(ell_val, jnp.float32))

    kernel = functools.partial(_sgc_fused_kernel, tm=tm, max_nnz=max_nnz,
                               n_pad=n_pad)

    # Resident VMEM footprint: x (in) + out + 2x ping-pong scratch (+ tiny ELL
    # blocks), doubled for pipelining headroom; clamp to safe per-chip bounds.
    resident_bytes = 4 * n_pad * f_pad * 6 + 4 * tm * 128 * 4
    vmem_limit = int(min(64 * 1024 * 1024,
                         max(16 * 1024 * 1024, 2 * resident_bytes)))

    out = pl.pallas_call(
        kernel,
        out_shape=jax.ShapeDtypeStruct((n_pad, f_pad), x.dtype),
        grid_spec=pltpu.PrefetchScalarGridSpec(
            num_scalar_prefetch=0,
            grid=(int(k_hops), n_pad // tm),   # hop axis outer, row blocks inner
            in_specs=[
                pl.BlockSpec((tm, max_nnz), lambda k, i: (i, 0)),   # ELL idx
                pl.BlockSpec((tm, max_nnz), lambda k, i: (i, 0)),   # ELL val
                pl.BlockSpec((n_pad, f_pad), lambda k, i: (0, 0)),  # x resident
            ],
            out_specs=pl.BlockSpec((n_pad, f_pad), lambda k, i: (0, 0)),
            scratch_shapes=[pltpu.VMEM((2 * n_pad, f_pad), jnp.float32)],
        ),
        compiler_params=pltpu.CompilerParams(
            # ping-pong scratch carries state across grid steps -> serial grid
            dimension_semantics=("arbitrary", "arbitrary"),
            vmem_limit_bytes=vmem_limit,
        ),
    )(idxp, valp, xp)

    return out[:n, :f]


def csr_to_ell(indptr, indices, values):
    """Host-side glue: CSR (what graph.csr() yields) -> padded ELL arrays."""
    indptr = np.asarray(indptr)
    indices = np.asarray(indices)
    values = np.asarray(values)
    n = int(indptr.shape[0]) - 1
    deg = np.diff(indptr)
    max_nnz = max(int(deg.max()) if n > 0 else 0, 1)
    ell_idx = np.zeros((n, max_nnz), np.int32)
    ell_val = np.zeros((n, max_nnz), np.float32)
    for r in range(n):
        s, e = int(indptr[r]), int(indptr[r + 1])
        ell_idx[r, :e - s] = indices[s:e]
        ell_val[r, :e - s] = values[s:e]
    return jnp.asarray(ell_idx), jnp.asarray(ell_val)


class Propagate:
    """JAX/Pallas equivalent of the PyTorch Propagate module."""

    def __init__(self, K: int = -1, cached: bool = False):
        self.K = K
        self.cached = cached
        self._cached_x = None

    def reset_parameters(self):
        self._cached_x = None

    def __call__(self, x, graph_ell):
        cache = self._cached_x
        if cache is None:
            ell_idx, ell_val = graph_ell
            x = sgc_propagate_pallas(ell_idx, ell_val, x, self.K)
            if self.cached:
                self._cached_x = x
            return x
        # matches torch `cached` semantics; detach() is a no-op in JAX
        return cache


if __name__ == "__main__":
    N, F, K = 256, 32, 2
    key = jax.random.PRNGKey(0)
    kx, kv = jax.random.split(key)
    x = jax.random.normal(kx, (N, F), jnp.float32)

    # Deterministic CSR graph: each node connects to {i, (i+1)%N, (i+5)%N}.
    nbrs = np.sort(
        np.stack([np.arange(N), (np.arange(N) + 1) % N, (np.arange(N) + 5) % N],
                 axis=1), axis=1)
    indices = nbrs.reshape(-1).astype(np.int32)
    indptr = (np.arange(N + 1) * 3).astype(np.int32)
    values = (np.asarray(jax.random.uniform(kv, (indices.shape[0],),
                                            jnp.float32)) * 0.5 + 0.25
              ).astype(np.float32)

    ell_idx, ell_val = csr_to_ell(indptr, indices, values)

    prop = Propagate(K=K, cached=True)
    out = prop(x, (ell_idx, ell_val))
    out = jax.block_until_ready(out)

    # Dense float64 reference: x <- A @ x, K times.
    A = np.zeros((N, N), np.float64)
    for r in range(N):
        s, e = int(indptr[r]), int(indptr[r + 1])
        A[r, indices[s:e]] = values[s:e]
    ref = np.asarray(x, np.float64)
    for _ in range(K):
        ref = A @ ref
    # MXU f32 matmuls may take bf16 passes at default precision -> relaxed tol.
    np.testing.assert_allclose(np.asarray(out, np.float64), ref,
                               rtol=2e-2, atol=2e-2)

    # cached path returns the stored result without recomputation
    out_cached = prop(x, (ell_idx, ell_val))
    assert out_cached is out

    print("KERNEL_OK")
</pallas_src>

<mosaic_0001>
module attributes {stable_mosaic.version = 11 : i64} {
  func.func @_sgc_fused_kernel(%arg0: i32, %arg1: i32, %arg2: memref<128x3xi32, #tpu.memory_space<vmem>>, %arg3: memref<128x3xf32, #tpu.memory_space<vmem>>, %arg4: memref<256x128xf32, #tpu.memory_space<vmem>>, %arg5: memref<256x128xf32, #tpu.memory_space<vmem>>, %arg6: memref<512x128xf32, #tpu.memory_space<vmem>>) attributes {dimension_semantics = [#tpu.dimension_semantics<arbitrary>, #tpu.dimension_semantics<arbitrary>], iteration_bounds = array<i64: 2, 2>, scalar_prefetch = 0 : i64, scratch_operands = 1 : i64, tpu.core_type = #tpu.core_type<tc>, window_params = [{transform_indices = @transform_0, window_bounds = array<i64: 128, 3>}, {transform_indices = @transform_1, window_bounds = array<i64: 128, 3>}, {pipeline_mode = #tpu.pipeline_mode<synchronous>, transform_indices = @transform_2, window_bounds = array<i64: 256, 128>}, {pipeline_mode = #tpu.pipeline_mode<synchronous>, transform_indices = @transform_3, window_bounds = array<i64: 256, 128>}]} {
    %c2_i32 = arith.constant 2 : i32
    %0 = arith.remsi %arg0, %c2_i32 : i32
    %c256_i32 = arith.constant 256 : i32
    %1 = arith.muli %0, %c256_i32 : i32
    %2 = tpu.assume_multiple %1, 8 : i32
    %c1_i32 = arith.constant 1 : i32
    %3 = arith.addi %arg0, %c1_i32 : i32
    %c2_i32_0 = arith.constant 2 : i32
    %4 = arith.remsi %3, %c2_i32_0 : i32
    %c256_i32_1 = arith.constant 256 : i32
    %5 = arith.muli %4, %c256_i32_1 : i32
    %6 = tpu.assume_multiple %5, 8 : i32
    %c128_i32 = arith.constant 128 : i32
    %7 = arith.muli %arg1, %c128_i32 : i32
    %8 = tpu.assume_multiple %7, 8 : i32
    %c0_i32 = arith.constant 0 : i32
    %9 = arith.cmpi eq, %arg0, %c0_i32 : i32
    %c0_i32_2 = arith.constant 0 : i32
    %10 = arith.cmpi eq, %arg1, %c0_i32_2 : i32
    %11 = arith.andi %9, %10 : i1
    %12 = arith.extui %11 : i1 to i32
    %c0_i32_3 = arith.constant 0 : i32
    %13 = arith.cmpi ne, %12, %c0_i32_3 : i32
    scf.if %13 {
      %c0_15 = arith.constant 0 : index
      %c0_16 = arith.constant 0 : index
      %54 = vector.load %arg4[%c0_15, %c0_16] : memref<256x128xf32, #tpu.memory_space<vmem>>, vector<256x128xf32>
      %c0_17 = arith.constant 0 : index
      %c0_18 = arith.constant 0 : index
      %55 = vector.load %arg6[%c0_17, %c0_18] : memref<512x128xf32, #tpu.memory_space<vmem>>, vector<256x128xf32>
      tpu.vector_store %arg6[%c0_17, %c0_18], %54 {strides = array<i32>} : memref<512x128xf32, #tpu.memory_space<vmem>>, vector<256x128xf32>,
    } else {
    }
    %c0 = arith.constant 0 : index
    %c0_4 = arith.constant 0 : index
    %14 = vector.load %arg2[%c0, %c0_4] : memref<128x3xi32, #tpu.memory_space<vmem>>, vector<128x3xi32>
    %c0_5 = arith.constant 0 : index
    %c0_6 = arith.constant 0 : index
    %15 = vector.load %arg3[%c0_5, %c0_6] : memref<128x3xf32, #tpu.memory_space<vmem>>, vector<128x3xf32>
    %16 = tpu.iota {dimensions = array<i32: 1>} : vector<128x256xi32>
    %cst = arith.constant 0.000000e+00 : f32
    %17 = vector.broadcast %cst : f32 to vector<128x256xf32>
    %18 = vector.extract_strided_slice %14 {offsets = [0, 0], sizes = [128, 1], strides = [1, 1]} : vector<128x3xi32> to vector<128x1xi32>
    %19 = vector.extract_strided_slice %15 {offsets = [0, 0], sizes = [128, 1], strides = [1, 1]} : vector<128x3xf32> to vector<128x1xf32>
    %20 = vector.broadcast %18 : vector<128x1xi32> to vector<128x256xi32>
    %21 = arith.cmpi eq, %16, %20 : vector<128x256xi32>
    %cst_7 = arith.constant 0.000000e+00 : f32
    %22 = vector.shape_cast %19 : vector<128x1xf32> to vector<128x1xf32>
    %23 = vector.broadcast %22 : vector<128x1xf32> to vector<128x256xf32>
    %24 = vector.broadcast %cst_7 : f32 to vector<128x256xf32>
    %25 = arith.select %21, %23, %24 : vector<128x256xi1>, vector<128x256xf32>
    %26 = arith.addf %17, %25 : vector<128x256xf32>
    %27 = vector.extract_strided_slice %14 {offsets = [0, 1], sizes = [128, 1], strides = [1, 1]} : vector<128x3xi32> to vector<128x1xi32>
    %28 = vector.extract_strided_slice %15 {offsets = [0, 1], sizes = [128, 1], strides = [1, 1]} : vector<128x3xf32> to vector<128x1xf32>
    %29 = vector.broadcast %27 : vector<128x1xi32> to vector<128x256xi32>
    %30 = arith.cmpi eq, %16, %29 : vector<128x256xi32>
    %cst_8 = arith.constant 0.000000e+00 : f32
    %31 = vector.shape_cast %28 : vector<128x1xf32> to vector<128x1xf32>
    %32 = vector.broadcast %31 : vector<128x1xf32> to vector<128x256xf32>
    %33 = vector.broadcast %cst_8 : f32 to vector<128x256xf32>
    %34 = arith.select %30, %32, %33 : vector<128x256xi1>, vector<128x256xf32>
    %35 = arith.addf %26, %34 : vector<128x256xf32>
    %36 = vector.extract_strided_slice %14 {offsets = [0, 2], sizes = [128, 1], strides = [1, 1]} : vector<128x3xi32> to vector<128x1xi32>
    %37 = vector.extract_strided_slice %15 {offsets = [0, 2], sizes = [128, 1], strides = [1, 1]} : vector<128x3xf32> to vector<128x1xf32>
    %38 = vector.broadcast %36 : vector<128x1xi32> to vector<128x256xi32>
    %39 = arith.cmpi eq, %16, %38 : vector<128x256xi32>
    %cst_9 = arith.constant 0.000000e+00 : f32
    %40 = vector.shape_cast %37 : vector<128x1xf32> to vector<128x1xf32>
    %41 = vector.broadcast %40 : vector<128x1xf32> to vector<128x256xf32>
    %42 = vector.broadcast %cst_9 : f32 to vector<128x256xf32>
    %43 = arith.select %39, %41, %42 : vector<128x256xi1>, vector<128x256xf32>
    %44 = arith.addf %35, %43 : vector<128x256xf32>
    %45 = arith.index_cast %2 : i32 to index
    %c0_10 = arith.constant 0 : index
    %46 = vector.load %arg6[%45, %c0_10] : memref<512x128xf32, #tpu.memory_space<vmem>>, vector<256x128xf32>
    %cst_11 = arith.constant dense<0.000000e+00> : vector<128x128xf32>
    %47 = tpu.matmul %44, %46, %cst_11 {dimension_numbers = #tpu.dot_dimension_numbers<[1], [0], [0], [1], [0, 0, 1, 1], [], []>} : vector<128x256xf32>, vector<256x128xf32>, vector<128x128xf32> -> vector<128x128xf32>
    %48 = arith.addi %6, %8 : i32
    %49 = arith.index_cast %48 : i32 to index
    %c0_12 = arith.constant 0 : index
    %50 = vector.load %arg6[%49, %c0_12] : memref<512x128xf32, #tpu.memory_space<vmem>>, vector<128x128xf32>
    tpu.vector_store %arg6[%49, %c0_12], %47 {strides = array<i32>} : memref<512x128xf32, #tpu.memory_space<vmem>>, vector<128x128xf32>,
    %c1_i32_13 = arith.constant 1 : i32
    %51 = arith.cmpi eq, %arg0, %c1_i32_13 : i32
    %52 = arith.extui %51 : i1 to i32
    %c0_i32_14 = arith.constant 0 : i32
    %53 = arith.cmpi ne, %52, %c0_i32_14 : i32
    scf.if %53 {
      %54 = arith.index_cast %8 : i32 to index
      %c0_15 = arith.constant 0 : index
      %55 = vector.load %arg5[%54, %c0_15] : memref<256x128xf32, #tpu.memory_space<vmem>>, vector<128x128xf32>
      tpu.vector_store %arg5[%54, %c0_15], %47 {strides = array<i32>} : memref<256x128xf32, #tpu.memory_space<vmem>>, vector<128x128xf32>,
    } else {
    }
    return
  }
  func.func @transform_0(%arg0: i32, %arg1: i32) -> (i32, i32) {
    %c0_i32 = arith.constant 0 : i32
    %c0_i32_0 = arith.constant 0 : i32
    return %arg1, %c0_i32 : i32, i32
  }
  func.func @transform_1(%arg0: i32, %arg1: i32) -> (i32, i32) {
    %c0_i32 = arith.constant 0 : i32
    %c0_i32_0 = arith.constant 0 : i32
    return %arg1, %c0_i32 : i32, i32
  }
  func.func @transform_2(%arg0: i32, %arg1: i32) -> (i32, i32) {
    %c0_i32 = arith.constant 0 : i32
    %c0_i32_0 = arith.constant 0 : i32
    %c0_i32_1 = arith.constant 0 : i32
    return %c0_i32, %c0_i32_0 : i32, i32
  }
  func.func @transform_3(%arg0: i32, %arg1: i32) -> (i32, i32) {
    %c0_i32 = arith.constant 0 : i32
    %c0_i32_0 = arith.constant 0 : i32
    %c0_i32_1 = arith.constant 0 : i32
    return %c0_i32, %c0_i32_0 : i32, i32
  }
}

</mosaic_0001>

<llo_original>
// kernel: tpu_custom_call.1
$region0: #{tpu_custom_call.1}
  #allocation0 [shape = 'u32[]', space=smem, size = 0x4, offset = 0x4, fixed_abs, tag = 'smem constant byte address 0x4 - core index']
  #allocation1 [shape = 'u32[72,128]{1,0:T(1,128)}', space=vmem, size = 0x9000, scoped, tag = 'internal scratch']
  #allocation2 [shape = 'f32[512,128]{1,0:T(8,128)}', space=vmem, size = 0x40000, scoped, tag = 'scratch operand']
  %s0 = inlined_call_operand.vmem [shape: s32[256,3], index: 0, kind: input, shape index: {}]
  %s1 = inlined_call_operand.vmem [shape: f32[256,3], index: 1, kind: input, shape index: {}]
  %s2 = inlined_call_operand.vmem [shape: f32[256,128], index: 2, kind: input, shape index: {}]
  %s3 = inlined_call_operand.hbm [shape: f32[256,128], index: 3, kind: output, shape index: {}]
  %s4 = sld [smem:[#allocation0]]
  $region53: #{tpu_custom_call.1} parent=0
    _
  %s6 = ssub.s32 1, %s4
  %s7 = scalar_select 0, %s6, %s4
  $region1: #{tpu_custom_call.1} parent=0
    #allocation3 [shape = 'u8[131072]{0}', space=vmem, size = 0x20000, scoped, tag = 'output window, operand 0, single buffered']
    #allocation4 [shape = 's32[2]{0}', space=sflag, size = 0x8, scoped, tag = 'scoped memory for tpu_custom_call.1']
    %8 = vsyncpa [#allocation4], 0
    loop: start=0, step=1, limit=6
    $region2: #{tpu_custom_call.1} parent=1 // loop_pre_header
      _
    $region3: #{tpu_custom_call.1} parent=1 // loop_header
      %s10 = sphi 0, %s14
      %p11 = scmp.ge.s32.totalorder %s10, 6
      %s17 = sphi 0, %s29
      %s18 = sphi 0, %s25
      %s19 = sphi 0, %s17
      %s20 = sphi 0, %s18
      %s21 = sphi 0, %s19
      %s22 = sphi 0, %s20
      %s32 = sphi 0, %s34
      %s35 = sphi 0, %s32
      %s36 = sphi 0, %s35
      %s52 = sphi 0, %s36
      %s58 = sphi 0, %s60
      %s61 = sphi 0, %s58
      %s62 = sphi 0, %s61
      %s78 = sphi 0, %s62
      %s82 = sphi 0, %s82
      %s84 = sphi 0, %s82
      %s85 = sphi 0, %s84
      %s99 = sphi 0, %s85
      %s103 = sphi 0, %s103
      %s105 = sphi 0, %s103
      %s106 = sphi 0, %s105
      %s120 = sphi 0, %s106
    $region4: #{tpu_custom_call.1} parent=1 // loop_header_branch
      %13 = sbr.rel (%p11) target = $region8
    $region5: #{tpu_custom_call.1} parent=1 // loop_body
      %s15 = ssub.s32 %s10, 1
      %s16 = ssub.s32 %s10, 2
      %s23 = sadd.s32 1, %s18
      %p24 = scmp.ge.s32.totalorder %s23, 2
      %s25 = scalar_select %p24, 0, %s23
      %s26 = sadd.s32 1, %s17
      %s27 = scalar_select %p24, %s26, %s17
      %p28 = scmp.ge.s32.totalorder %s27, 2
      %s29 = scalar_select %p28, 0, %s27
      %s30 = ssub.s32 %s18, %s25
      %p31 = scmp.eq.s32.totalorder %s30, 0
      %s33 = sadd.s32 %s32, 1
      %s34 = scalar_select %p31, %s32, %s33
      %p37 = pneg %p31
      %p38 = scmp.eq.s32.totalorder %s10, 3
      %p39 = por %p37, %p38
      %p40 = scmp.ne.s32.totalorder %s32, %s35
      %p41 = scmp.eq.s32.totalorder %s10, 0
      %p42 = por %p40, %p41
      %p43 = scmp.ne.s32.totalorder %s32, %s35
      %p44 = scmp.eq.s32.totalorder %s15, 3
      %p45 = por %p43, %p44
      %p46 = scmp.ne.s32.totalorder %s35, %s36
      %p47 = scmp.eq.s32.totalorder %s15, 0
      %p48 = por %p46, %p47
      %p49 = scmp.ne.s32.totalorder %s35, %s36
      %p50 = scmp.eq.s32.totalorder %s16, 3
      %p51 = por %p49, %p50
      %p53 = scmp.ne.s32.totalorder %s36, %s52
      %p54 = scmp.eq.s32.totalorder %s16, 0
      %p55 = por %p53, %p54
      %s56 = ssub.s32 %s18, %s25
      %p57 = scmp.eq.s32.totalorder %s56, 0
      %s59 = sadd.s32 %s58, 1
      %s60 = scalar_select %p57, %s58, %s59
      %p63 = pneg %p57
      %p64 = scmp.eq.s32.totalorder %s10, 3
      %p65 = por %p63, %p64
      %p66 = scmp.ne.s32.totalorder %s58, %s61
      %p67 = scmp.eq.s32.totalorder %s10, 0
      %p68 = por %p66, %p67
      %p69 = scmp.ne.s32.totalorder %s58, %s61
      %p70 = scmp.eq.s32.totalorder %s15, 3
      %p71 = por %p69, %p70
      %p72 = scmp.ne.s32.totalorder %s61, %s62
      %p73 = scmp.eq.s32.totalorder %s15, 0
      %p74 = por %p72, %p73
      %p75 = scmp.ne.s32.totalorder %s61, %s62
      %p76 = scmp.eq.s32.totalorder %s16, 3
      %p77 = por %p75, %p76
      %p79 = scmp.ne.s32.totalorder %s62, %s78
      %p80 = scmp.eq.s32.totalorder %s16, 0
      %p81 = por %p79, %p80
      %s83 = sadd.s32 %s82, 1
      %p86 = scmp.eq.s32.totalorder %s10, 3
      %p87 = scmp.ne.s32.totalorder %s82, %s84
      %p88 = scmp.eq.s32.totalorder %s10, 0
      %p89 = por %p87, %p88
      %p90 = scmp.ne.s32.totalorder %s82, %s84
      %p91 = scmp.eq.s32.totalorder %s15, 3
      %p92 = por %p90, %p91
      %p93 = scmp.ne.s32.totalorder %s84, %s85
      %p94 = scmp.eq.s32.totalorder %s15, 0
      %p95 = por %p93, %p94
      %p96 = scmp.ne.s32.totalorder %s84, %s85
      %p97 = scmp.eq.s32.totalorder %s16, 3
      %p98 = por %p96, %p97
      %p100 = scmp.ne.s32.totalorder %s85, %s99
      %p101 = scmp.eq.s32.totalorder %s16, 0
      %p102 = por %p100, %p101
      %s104 = sadd.s32 %s103, 1
      %p107 = scmp.eq.s32.totalorder %s10, 3
      %p108 = scmp.ne.s32.totalorder %s103, %s105
      %p109 = scmp.eq.s32.totalorder %s10, 0
      %p110 = por %p108, %p109
      %p111 = scmp.ne.s32.totalorder %s103, %s105
      %p112 = scmp.eq.s32.totalorder %s15, 3
      %p113 = por %p111, %p112
      %p114 = scmp.ne.s32.totalorder %s105, %s106
      %p115 = scmp.eq.s32.totalorder %s15, 0
      %p116 = por %p114, %p115
      %p117 = scmp.ne.s32.totalorder %s105, %s106
      %p118 = scmp.eq.s32.totalorder %s16, 3
      %p119 = por %p117, %p118
      %p121 = scmp.ne.s32.totalorder %s106, %s120
      %p122 = scmp.eq.s32.totalorder %s16, 0
      %p123 = por %p121, %p122
      %p124 = scmp.le.s32.totalorder 1, %s10
      %p125 = scmp.lt.s32.totalorder %s10, 5
      %p126 = pnand %p124, %p125
      %p127 = pneg %p126
      // Predicated region
      $region9: #{tpu_custom_call.1} parent=5 // pred_check
        _
      $region10: #{tpu_custom_call.1} parent=5 // pred_check_branch
        %129 = sbr.rel (%p126) target = $region12
      $region11: #{tpu_custom_call.1} parent=5 // pred_region
        %s130 = ssub.s32 %s10, 1
        // Predicated region
        $region13: #{tpu_custom_call.1} parent=11 // pred_check
          %p131 = pneg %p95
        $region14: #{tpu_custom_call.1} parent=11 // pred_check_branch
          %133 = sbr.rel (%p131) target = $region16
        $region15: #{tpu_custom_call.1} parent=11 // pred_region
          _
        $region16: #{tpu_custom_call.1} parent=11 // pred_fallthru
          _
      $region12: #{tpu_custom_call.1} parent=5 // pred_fallthru
        _
      %p134 = scmp.lt.s32.totalorder %s10, 4
      // Predicated region
      $region17: #{tpu_custom_call.1} parent=5 // pred_check
        %p135 = pneg %p134
      $region18: #{tpu_custom_call.1} parent=5 // pred_check_branch
        %137 = sbr.rel (%p135) target = $region20
      $region19: #{tpu_custom_call.1} parent=5 // pred_region
        // Predicated region
        $region21: #{tpu_custom_call.1} parent=19 // pred_check
          %p138 = pneg %p42
        $region22: #{tpu_custom_call.1} parent=19 // pred_check_branch
          %140 = sbr.rel (%p138) target = $region24
        $region23: #{tpu_custom_call.1} parent=19 // pred_region
          %s141 = smul.u32 16, %s18
          %p142 = scmp.lt.s32.totalorder %s141, 31
          %s143 = scalar_select %p142, %s141, 31
          %s144 = smul.addr %s143, 8
          %s145 = scalar_lea.vmem %s0, %s144
          %s146 = smul.u32 16, %s18
        $region24: #{tpu_custom_call.1} parent=19 // pred_fallthru
          _
        // Predicated region
        $region25: #{tpu_custom_call.1} parent=19 // pred_check
          %p147 = pneg %p68
        $region26: #{tpu_custom_call.1} parent=19 // pred_check_branch
          %149 = sbr.rel (%p147) target = $region28
        $region27: #{tpu_custom_call.1} parent=19 // pred_region
          %s150 = smul.u32 16, %s18
          %p151 = scmp.lt.s32.totalorder %s150, 31
          %s152 = scalar_select %p151, %s150, 31
          %s153 = smul.addr %s152, 8
          %s154 = scalar_lea.vmem %s1, %s153
          %s155 = smul.u32 16, %s18
        $region28: #{tpu_custom_call.1} parent=19 // pred_fallthru
          _
      $region20: #{tpu_custom_call.1} parent=5 // pred_fallthru
        _
      %p156 = scmp.le.s32.totalorder 1, %s10
      %p157 = scmp.lt.s32.totalorder %s10, 5
      %p158 = pnand %p156, %p157
      %p159 = pneg %p158
      // Predicated region
      $region29: #{tpu_custom_call.1} parent=5 // pred_check
        _
      $region30: #{tpu_custom_call.1} parent=5 // pred_check_branch
        %161 = sbr.rel (%p158) target = $region32
      $region31: #{tpu_custom_call.1} parent=5 // pred_region
        %s162 = ssub.s32 %s10, 1
        %s163 = smul.u32 16, %s20
        %p164 = scmp.lt.s32.totalorder %s163, 31
        %s165 = scalar_select %p164, %s163, 31
        %s166 = smul.addr %s165, 8
        %s167 = scalar_lea.vmem %s0, %s166
        %p168 = pneg %p48
        %p169 = pneg %p45
        %s170 = smul.u32 16, %s20
        %p171 = scmp.lt.s32.totalorder %s170, 31
        %s172 = scalar_select %p171, %s170, 31
        %s173 = smul.addr %s172, 8
        %s174 = scalar_lea.vmem %s1, %s173
        %p175 = pneg %p74
        %p176 = pneg %p71
        %p177 = pneg %p95
        %p178 = pneg %p92
        %p179 = pneg %p116
        %p180 = pneg %p113
        %s181 = smul.u32 16, %s20
        %p182 = scmp.lt.s32.totalorder %s181, 31
        %s183 = scalar_select %p182, %s181, 31
        %s184 = smul.addr %s183, 8
        %s185 = scalar_lea.vmem %s0, %s184
        %s186 = smul.u32 16, %s20
        %s187 = smul.u32 16, %s20
        %p188 = scmp.lt.s32.totalorder %s187, 31
        %s189 = scalar_select %p188, %s187, 31
        %s190 = smul.addr %s189, 8
        %s191 = scalar_lea.vmem %s1, %s190
        %s192 = smul.u32 16, %s20
        %p193 = scmp.lt.s32.totalorder %s19, 0
        %s194 = ssub.s32 0, %s19
        %s195 = scalar_select %p193, %s194, %s19
        %s196 = sand.u32 %s195, 1
        %s197 = ssub.s32 0, %s196
        %s198 = scalar_select %p193, %s197, %s196
        %s199 = smul.u32 %s198, 256
        %s200 = sadd.s32 %s19, 1
        %p201 = scmp.lt.s32.totalorder %s200, 0
        %s202 = ssub.s32 0, %s200
        %s203 = scalar_select %p201, %s202, %s200
        %s204 = sand.u32 %s203, 1
        %s205 = ssub.s32 0, %s204
        %s206 = scalar_select %p201, %s205, %s204
        %s207 = smul.u32 %s206, 256
        %s208 = smul.u32 %s20, 128
        %p209 = scmp.eq.s32.totalorder %s19, 0
        %p210 = scmp.eq.s32.totalorder %s20, 0
        %p211 = pnand %p209, %p210
        %p212 = pneg %p211
        // Predicated region
        $region33: #{tpu_custom_call.1} parent=31 // pred_check
          _
        $region34: #{tpu_custom_call.1} parent=31 // pred_check_branch
          %214 = sbr.rel (%p211) target = $region36
        $region35: #{tpu_custom_call.1} parent=31 // pred_region
          %v215 = vld [vmem:[%s2] sm:$0xff]
          %v216 = vld [vmem:[%s2 + $0x8] sm:$0xff]
          %v217 = vld [vmem:[%s2 + $0x10] sm:$0xff]
          %v218 = vld [vmem:[%s2 + $0x18] sm:$0xff]
          %v219 = vld [vmem:[%s2 + $0x20] sm:$0xff]
          %v220 = vld [vmem:[%s2 + $0x28] sm:$0xff]
          %v221 = vld [vmem:[%s2 + $0x30] sm:$0xff]
          %v222 = vld [vmem:[%s2 + $0x38] sm:$0xff]
          %v223 = vld [vmem:[%s2 + $0x40] sm:$0xff]
          %v224 = vld [vmem:[%s2 + $0x48] sm:$0xff]
          %v225 = vld [vmem:[%s2 + $0x50] sm:$0xff]
          %v226 = vld [vmem:[%s2 + $0x58] sm:$0xff]
          %v227 = vld [vmem:[%s2 + $0x60] sm:$0xff]
          %v228 = vld [vmem:[%s2 + $0x68] sm:$0xff]
          %v229 = vld [vmem:[%s2 + $0x70] sm:$0xff]
          %v230 = vld [vmem:[%s2 + $0x78] sm:$0xff]
          %v231 = vld [vmem:[%s2 + $0x80] sm:$0xff]
          %v232 = vld [vmem:[%s2 + $0x88] sm:$0xff]
          %v233 = vld [vmem:[%s2 + $0x90] sm:$0xff]
          %v234 = vld [vmem:[%s2 + $0x98] sm:$0xff]
          %v235 = vld [vmem:[%s2 + $0xa0] sm:$0xff]
          %v236 = vld [vmem:[%s2 + $0xa8] sm:$0xff]
          %v237 = vld [vmem:[%s2 + $0xb0] sm:$0xff]
          %v238 = vld [vmem:[%s2 + $0xb8] sm:$0xff]
          %v239 = vld [vmem:[%s2 + $0xc0] sm:$0xff]
          %v240 = vld [vmem:[%s2 + $0xc8] sm:$0xff]
          %v241 = vld [vmem:[%s2 + $0xd0] sm:$0xff]
          %v242 = vld [vmem:[%s2 + $0xd8] sm:$0xff]
          %v243 = vld [vmem:[%s2 + $0xe0] sm:$0xff]
          %v244 = vld [vmem:[%s2 + $0xe8] sm:$0xff]
          %v245 = vld [vmem:[%s2 + $0xf0] sm:$0xff]
          %v246 = vld [vmem:[%s2 + $0xf8] sm:$0xff]
          %247 = vst [vmem:[#allocation2] sm:$0xff] %v215
          %248 = vst [vmem:[#allocation2 + $0x8] sm:$0xff] %v216
          %249 = vst [vmem:[#allocation2 + $0x10] sm:$0xff] %v217
          %250 = vst [vmem:[#allocation2 + $0x18] sm:$0xff] %v218
          %251 = vst [vmem:[#allocation2 + $0x20] sm:$0xff] %v219
          %252 = vst [vmem:[#allocation2 + $0x28] sm:$0xff] %v220
          %253 = vst [vmem:[#allocation2 + $0x30] sm:$0xff] %v221
          %254 = vst [vmem:[#allocation2 + $0x38] sm:$0xff] %v222
          %255 = vst [vmem:[#allocation2 + $0x40] sm:$0xff] %v223
          %256 = vst [vmem:[#allocation2 + $0x48] sm:$0xff] %v224
          %257 = vst [vmem:[#allocation2 + $0x50] sm:$0xff] %v225
          %258 = vst [vmem:[#allocation2 + $0x58] sm:$0xff] %v226
          %259 = vst [vmem:[#allocation2 + $0x60] sm:$0xff] %v227
          %260 = vst [vmem:[#allocation2 + $0x68] sm:$0xff] %v228
          %261 = vst [vmem:[#allocation2 + $0x70] sm:$0xff] %v229
          %262 = vst [vmem:[#allocation2 + $0x78] sm:$0xff] %v230
          %263 = vst [vmem:[#allocation2 + $0x80] sm:$0xff] %v231
          %264 = vst [vmem:[#allocation2 + $0x88] sm:$0xff] %v232
          %265 = vst [vmem:[#allocation2 + $0x90] sm:$0xff] %v233
          %266 = vst [vmem:[#allocation2 + $0x98] sm:$0xff] %v234
          %267 = vst [vmem:[#allocation2 + $0xa0] sm:$0xff] %v235
          %268 = vst [vmem:[#allocation2 + $0xa8] sm:$0xff] %v236
          %269 = vst [vmem:[#allocation2 + $0xb0] sm:$0xff] %v237
          %270 = vst [vmem:[#allocation2 + $0xb8] sm:$0xff] %v238
          %271 = vst [vmem:[#allocation2 + $0xc0] sm:$0xff] %v239
          %272 = vst [vmem:[#allocation2 + $0xc8] sm:$0xff] %v240
          %273 = vst [vmem:[#allocation2 + $0xd0] sm:$0xff] %v241
          %274 = vst [vmem:[#allocation2 + $0xd8] sm:$0xff] %v242
          %275 = vst [vmem:[#allocation2 + $0xe0] sm:$0xff] %v243
          %276 = vst [vmem:[#allocation2 + $0xe8] sm:$0xff] %v244
          %277 = vst [vmem:[#allocation2 + $0xf0] sm:$0xff] %v245
          %278 = vst [vmem:[#allocation2 + $0xf8] sm:$0xff] %v246
        $region36: #{tpu_custom_call.1} parent=31 // pred_fallthru
          _
        %v279 = vld [vmem:[%s185] sm:$0xff]
        %v280 = vld [vmem:[%s185 + $0x8] sm:$0xff]
        %v281 = vld [vmem:[%s185 + $0x10] sm:$0xff]
        %v282 = vld [vmem:[%s185 + $0x18] sm:$0xff]
        %v283 = vld [vmem:[%s185 + $0x20] sm:$0xff]
        %v284 = vld [vmem:[%s185 + $0x28] sm:$0xff]
        %v285 = vld [vmem:[%s185 + $0x30] sm:$0xff]
        %v286 = vld [vmem:[%s185 + $0x38] sm:$0xff]
        %v287 = vld [vmem:[%s185 + $0x40] sm:$0xff]
        %v288 = vld [vmem:[%s185 + $0x48] sm:$0xff]
        %v289 = vld [vmem:[%s185 + $0x50] sm:$0xff]
        %v290 = vld [vmem:[%s185 + $0x58] sm:$0xff]
        %v291 = vld [vmem:[%s185 + $0x60] sm:$0xff]
        %v292 = vld [vmem:[%s185 + $0x68] sm:$0xff]
        %v293 = vld [vmem:[%s185 + $0x70] sm:$0xff]
        %v294 = vld [vmem:[%s185 + $0x78] sm:$0xff]
        %v295 = vld [vmem:[%s191] sm:$0xff]
        %v296 = vld [vmem:[%s191 + $0x8] sm:$0xff]
        %v297 = vld [vmem:[%s191 + $0x10] sm:$0xff]
        %v298 = vld [vmem:[%s191 + $0x18] sm:$0xff]
        %v299 = vld [vmem:[%s191 + $0x20] sm:$0xff]
        %v300 = vld [vmem:[%s191 + $0x28] sm:$0xff]
        %v301 = vld [vmem:[%s191 + $0x30] sm:$0xff]
        %v302 = vld [vmem:[%s191 + $0x38] sm:$0xff]
        %v303 = vld [vmem:[%s191 + $0x40] sm:$0xff]
        %v304 = vld [vmem:[%s191 + $0x48] sm:$0xff]
        %v305 = vld [vmem:[%s191 + $0x50] sm:$0xff]
        %v306 = vld [vmem:[%s191 + $0x58] sm:$0xff]
        %v307 = vld [vmem:[%s191 + $0x60] sm:$0xff]
        %v308 = vld [vmem:[%s191 + $0x68] sm:$0xff]
        %v309 = vld [vmem:[%s191 + $0x70] sm:$0xff]
        %v310 = vld [vmem:[%s191 + $0x78] sm:$0xff]
        %v311 = vlaneseq
        %v312 = vand.u32 %v311, 127
        %v313 = vadd.s32 %v312, 128
        %314 = vset.pattern.permute.xlu0 0
        %315 = vperm.xlu0 %314, %v279
        %v316 = vpop.permute.xlu0 %315
        %317 = vset.pattern.permute.xlu0 0
        %318 = vperm.xlu0 %317, %v280
        %v319 = vpop.permute.xlu0 %318
        %320 = vset.pattern.permute.xlu0 0
        %321 = vperm.xlu0 %320, %v281
        %v322 = vpop.permute.xlu0 %321
        %323 = vset.pattern.permute.xlu0 0
        %324 = vperm.xlu0 %323, %v282
        %v325 = vpop.permute.xlu0 %324
        %326 = vset.pattern.permute.xlu0 0
        %327 = vperm.xlu0 %326, %v283
        %v328 = vpop.permute.xlu0 %327
        %329 = vset.pattern.permute.xlu0 0
        %330 = vperm.xlu0 %329, %v284
        %v331 = vpop.permute.xlu0 %330
        %332 = vset.pattern.permute.xlu0 0
        %333 = vperm.xlu0 %332, %v285
        %v334 = vpop.permute.xlu0 %333
        %335 = vset.pattern.permute.xlu0 0
        %336 = vperm.xlu0 %335, %v286
        %v337 = vpop.permute.xlu0 %336
        %338 = vset.pattern.permute.xlu0 0
        %339 = vperm.xlu0 %338, %v287
        %v340 = vpop.permute.xlu0 %339
        %341 = vset.pattern.permute.xlu0 0
        %342 = vperm.xlu0 %341, %v288
        %v343 = vpop.permute.xlu0 %342
        %344 = vset.pattern.permute.xlu0 0
        %345 = vperm.xlu0 %344, %v289
        %v346 = vpop.permute.xlu0 %345
        %347 = vset.pattern.permute.xlu0 0
        %348 = vperm.xlu0 %347, %v290
        %v349 = vpop.permute.xlu0 %348
        %350 = vset.pattern.permute.xlu0 0
        %351 = vperm.xlu0 %350, %v291
        %v352 = vpop.permute.xlu0 %351
        %353 = vset.pattern.permute.xlu0 0
        %354 = vperm.xlu0 %353, %v292
        %v355 = vpop.permute.xlu0 %354
        %356 = vset.pattern.permute.xlu0 0
        %357 = vperm.xlu0 %356, %v293
        %v358 = vpop.permute.xlu0 %357
        %359 = vset.pattern.permute.xlu0 0
        %360 = vperm.xlu0 %359, %v294
        %v361 = vpop.permute.xlu0 %360
        %vm362 = vcmp.eq.s32.totalorder %v312, %v316
        %vm363 = vcmp.eq.s32.totalorder %v313, %v316
        %vm364 = vcmp.eq.s32.totalorder %v312, %v319
        %vm365 = vcmp.eq.s32.totalorder %v313, %v319
        %vm366 = vcmp.eq.s32.totalorder %v312, %v322
        %vm367 = vcmp.eq.s32.totalorder %v313, %v322
        %vm368 = vcmp.eq.s32.totalorder %v312, %v325
        %vm369 = vcmp.eq.s32.totalorder %v313, %v325
        %vm370 = vcmp.eq.s32.totalorder %v312, %v328
        %vm371 = vcmp.eq.s32.totalorder %v313, %v328
        %vm372 = vcmp.eq.s32.totalorder %v312, %v331
        %vm373 = vcmp.eq.s32.totalorder %v313, %v331
        %vm374 = vcmp.eq.s32.totalorder %v312, %v334
        %vm375 = vcmp.eq.s32.totalorder %v313, %v334
        %vm376 = vcmp.eq.s32.totalorder %v312, %v337
        %vm377 = vcmp.eq.s32.totalorder %v313, %v337
        %vm378 = vcmp.eq.s32.totalorder %v312, %v340
        %vm379 = vcmp.eq.s32.totalorder %v313, %v340
        %vm380 = vcmp.eq.s32.totalorder %v312, %v343
        %vm381 = vcmp.eq.s32.totalorder %v313, %v343
        %vm382 = vcmp.eq.s32.totalorder %v312, %v346
        %vm383 = vcmp.eq.s32.totalorder %v313, %v346
        %vm384 = vcmp.eq.s32.totalorder %v312, %v349
        %vm385 = vcmp.eq.s32.totalorder %v313, %v349
        %vm386 = vcmp.eq.s32.totalorder %v312, %v352
        %vm387 = vcmp.eq.s32.totalorder %v313, %v352
        %vm388 = vcmp.eq.s32.totalorder %v312, %v355
        %vm389 = vcmp.eq.s32.totalorder %v313, %v355
        %vm390 = vcmp.eq.s32.totalorder %v312, %v358
        %vm391 = vcmp.eq.s32.totalorder %v313, %v358
        %vm392 = vcmp.eq.s32.totalorder %v312, %v361
        %vm393 = vcmp.eq.s32.totalorder %v313, %v361
        %395 = vset.pattern.permute.xlu0 0
        %396 = vperm.xlu0 %395, %v295
        %v397 = vpop.permute.xlu0 %396
        %400 = vset.pattern.permute.xlu0 0
        %401 = vperm.xlu0 %400, %v296
        %v402 = vpop.permute.xlu0 %401
        %405 = vset.pattern.permute.xlu0 0
        %406 = vperm.xlu0 %405, %v297
        %v407 = vpop.permute.xlu0 %406
        %410 = vset.pattern.permute.xlu0 0
        %411 = vperm.xlu0 %410, %v298
        %v412 = vpop.permute.xlu0 %411
        %415 = vset.pattern.permute.xlu0 0
        %416 = vperm.xlu0 %415, %v299
        %v417 = vpop.permute.xlu0 %416
        %420 = vset.pattern.permute.xlu0 0
        %421 = vperm.xlu0 %420, %v300
        %v422 = vpop.permute.xlu0 %421
        %425 = vset.pattern.permute.xlu0 0
        %426 = vperm.xlu0 %425, %v301
        %v427 = vpop.permute.xlu0 %426
        %430 = vset.pattern.permute.xlu0 0
        %431 = vperm.xlu0 %430, %v302
        %v432 = vpop.permute.xlu0 %431
        %435 = vset.pattern.permute.xlu0 0
        %436 = vperm.xlu0 %435, %v303
        %v437 = vpop.permute.xlu0 %436
        %440 = vset.pattern.permute.xlu0 0
        %441 = vperm.xlu0 %440, %v304
        %v442 = vpop.permute.xlu0 %441
        %445 = vset.pattern.permute.xlu0 0
        %446 = vperm.xlu0 %445, %v305
        %v447 = vpop.permute.xlu0 %446
        %450 = vset.pattern.permute.xlu0 0
        %451 = vperm.xlu0 %450, %v306
        %v452 = vpop.permute.xlu0 %451
        %455 = vset.pattern.permute.xlu0 0
        %456 = vperm.xlu0 %455, %v307
        %v457 = vpop.permute.xlu0 %456
        %460 = vset.pattern.permute.xlu0 0
        %461 = vperm.xlu0 %460, %v308
        %v462 = vpop.permute.xlu0 %461
        %465 = vset.pattern.permute.xlu0 0
        %466 = vperm.xlu0 %465, %v309
        %v467 = vpop.permute.xlu0 %466
        %470 = vset.pattern.permute.xlu0 0
        %471 = vperm.xlu0 %470, %v310
        %v472 = vpop.permute.xlu0 %471
        %v474 = vsel %vm362, %v397, 0.0
        %v475 = vsel %vm363, %v397, 0.0
        %v476 = vsel %vm364, %v402, 0.0
        %v477 = vsel %vm365, %v402, 0.0
        %v478 = vsel %vm366, %v407, 0.0
        %v479 = vsel %vm367, %v407, 0.0
        %v480 = vsel %vm368, %v412, 0.0
        %v481 = vsel %vm369, %v412, 0.0
        %v482 = vsel %vm370, %v417, 0.0
        %v483 = vsel %vm371, %v417, 0.0
        %v484 = vsel %vm372, %v422, 0.0
        %v485 = vsel %vm373, %v422, 0.0
        %v486 = vsel %vm374, %v427, 0.0
        %v487 = vsel %vm375, %v427, 0.0
        %v488 = vsel %vm376, %v432, 0.0
        %v489 = vsel %vm377, %v432, 0.0
        %v490 = vsel %vm378, %v437, 0.0
        %v491 = vsel %vm379, %v437, 0.0
        %v492 = vsel %vm380, %v442, 0.0
        %v493 = vsel %vm381, %v442, 0.0
        %v494 = vsel %vm382, %v447, 0.0
        %v495 = vsel %vm383, %v447, 0.0
        %v496 = vsel %vm384, %v452, 0.0
        %v497 = vsel %vm385, %v452, 0.0
        %v498 = vsel %vm386, %v457, 0.0
        %v499 = vsel %vm387, %v457, 0.0
        %v500 = vsel %vm388, %v462, 0.0
        %v501 = vsel %vm389, %v462, 0.0
        %v502 = vsel %vm390, %v467, 0.0
        %v503 = vsel %vm391, %v467, 0.0
        %v504 = vsel %vm392, %v472, 0.0
        %v505 = vsel %vm393, %v472, 0.0
        %v506 = vadd.f32 %v474, 0.0
        %v507 = vadd.f32 %v475, 0.0
        %v508 = vadd.f32 %v476, 0.0
        %v509 = vadd.f32 %v477, 0.0
        %v510 = vadd.f32 %v478, 0.0
        %v511 = vadd.f32 %v479, 0.0
        %v512 = vadd.f32 %v480, 0.0
        %v513 = vadd.f32 %v481, 0.0
        %v514 = vadd.f32 %v482, 0.0
        %v515 = vadd.f32 %v483, 0.0
        %v516 = vadd.f32 %v484, 0.0
        %v517 = vadd.f32 %v485, 0.0
        %v518 = vadd.f32 %v486, 0.0
        %v519 = vadd.f32 %v487, 0.0
        %v520 = vadd.f32 %v488, 0.0
        %v521 = vadd.f32 %v489, 0.0
        %v522 = vadd.f32 %v490, 0.0
        %v523 = vadd.f32 %v491, 0.0
        %v524 = vadd.f32 %v492, 0.0
        %v525 = vadd.f32 %v493, 0.0
        %v526 = vadd.f32 %v494, 0.0
        %v527 = vadd.f32 %v495, 0.0
        %v528 = vadd.f32 %v496, 0.0
        %v529 = vadd.f32 %v497, 0.0
        %v530 = vadd.f32 %v498, 0.0
        %v531 = vadd.f32 %v499, 0.0
        %v532 = vadd.f32 %v500, 0.0
        %v533 = vadd.f32 %v501, 0.0
        %v534 = vadd.f32 %v502, 0.0
        %v535 = vadd.f32 %v503, 0.0
        %v536 = vadd.f32 %v504, 0.0
        %v537 = vadd.f32 %v505, 0.0
        %538 = vset.pattern.permute.xlu0 1
        %539 = vperm.xlu0 %538, %v279
        %v540 = vpop.permute.xlu0 %539
        %541 = vset.pattern.permute.xlu0 1
        %542 = vperm.xlu0 %541, %v280
        %v543 = vpop.permute.xlu0 %542
        %544 = vset.pattern.permute.xlu0 1
        %545 = vperm.xlu0 %544, %v281
        %v546 = vpop.permute.xlu0 %545
        %547 = vset.pattern.permute.xlu0 1
        %548 = vperm.xlu0 %547, %v282
        %v549 = vpop.permute.xlu0 %548
        %550 = vset.pattern.permute.xlu0 1
        %551 = vperm.xlu0 %550, %v283
        %v552 = vpop.permute.xlu0 %551
        %553 = vset.pattern.permute.xlu0 1
        %554 = vperm.xlu0 %553, %v284
        %v555 = vpop.permute.xlu0 %554
        %556 = vset.pattern.permute.xlu0 1
        %557 = vperm.xlu0 %556, %v285
        %v558 = vpop.permute.xlu0 %557
        %559 = vset.pattern.permute.xlu0 1
        %560 = vperm.xlu0 %559, %v286
        %v561 = vpop.permute.xlu0 %560
        %562 = vset.pattern.permute.xlu0 1
        %563 = vperm.xlu0 %562, %v287
        %v564 = vpop.permute.xlu0 %563
        %565 = vset.pattern.permute.xlu0 1
        %566 = vperm.xlu0 %565, %v288
        %v567 = vpop.permute.xlu0 %566
        %568 = vset.pattern.permute.xlu0 1
        %569 = vperm.xlu0 %568, %v289
        %v570 = vpop.permute.xlu0 %569
        %571 = vset.pattern.permute.xlu0 1
        %572 = vperm.xlu0 %571, %v290
        %v573 = vpop.permute.xlu0 %572
        %574 = vset.pattern.permute.xlu0 1
        %575 = vperm.xlu0 %574, %v291
        %v576 = vpop.permute.xlu0 %575
        %577 = vset.pattern.permute.xlu0 1
        %578 = vperm.xlu0 %577, %v292
        %v579 = vpop.permute.xlu0 %578
        %580 = vset.pattern.permute.xlu0 1
        %581 = vperm.xlu0 %580, %v293
        %v582 = vpop.permute.xlu0 %581
        %583 = vset.pattern.permute.xlu0 1
        %584 = vperm.xlu0 %583, %v294
        %v585 = vpop.permute.xlu0 %584
        %vm586 = vcmp.eq.s32.totalorder %v312, %v540
        %vm587 = vcmp.eq.s32.totalorder %v313, %v540
        %vm588 = vcmp.eq.s32.totalorder %v312, %v543
        %vm589 = vcmp.eq.s32.totalorder %v313, %v543
        %vm590 = vcmp.eq.s32.totalorder %v312, %v546
        %vm591 = vcmp.eq.s32.totalorder %v313, %v546
        %vm592 = vcmp.eq.s32.totalorder %v312, %v549
        %vm593 = vcmp.eq.s32.totalorder %v313, %v549
        %vm594 = vcmp.eq.s32.totalorder %v312, %v552
        %vm595 = vcmp.eq.s32.totalorder %v313, %v552
        %vm596 = vcmp.eq.s32.totalorder %v312, %v555
        %vm597 = vcmp.eq.s32.totalorder %v313, %v555
        %vm598 = vcmp.eq.s32.totalorder %v312, %v558
        %vm599 = vcmp.eq.s32.totalorder %v313, %v558
        %vm600 = vcmp.eq.s32.totalorder %v312, %v561
        %vm601 = vcmp.eq.s32.totalorder %v313, %v561
        %vm602 = vcmp.eq.s32.totalorder %v312, %v564
        %vm603 = vcmp.eq.s32.totalorder %v313, %v564
        %vm604 = vcmp.eq.s32.totalorder %v312, %v567
        %vm605 = vcmp.eq.s32.totalorder %v313, %v567
        %vm606 = vcmp.eq.s32.totalorder %v312, %v570
        %vm607 = vcmp.eq.s32.totalorder %v313, %v570
        %vm608 = vcmp.eq.s32.totalorder %v312, %v573
        %vm609 = vcmp.eq.s32.totalorder %v313, %v573
        %vm610 = vcmp.eq.s32.totalorder %v312, %v576
        %vm611 = vcmp.eq.s32.totalorder %v313, %v576
        %vm612 = vcmp.eq.s32.totalorder %v312, %v579
        %vm613 = vcmp.eq.s32.totalorder %v313, %v579
        %vm614 = vcmp.eq.s32.totalorder %v312, %v582
        %vm615 = vcmp.eq.s32.totalorder %v313, %v582
        %vm616 = vcmp.eq.s32.totalorder %v312, %v585
        %vm617 = vcmp.eq.s32.totalorder %v313, %v585
        %618 = vset.pattern.permute.xlu0 1
        %619 = vperm.xlu0 %618, %v295
        %v620 = vpop.permute.xlu0 %619
        %622 = vset.pattern.permute.xlu0 1
        %623 = vperm.xlu0 %622, %v296
        %v624 = vpop.permute.xlu0 %623
        %626 = vset.pattern.permute.xlu0 1
        %627 = vperm.xlu0 %626, %v297
        %v628 = vpop.permute.xlu0 %627
        %630 = vset.pattern.permute.xlu0 1
        %631 = vperm.xlu0 %630, %v298
        %v632 = vpop.permute.xlu0 %631
        %634 = vset.pattern.permute.xlu0 1
        %635 = vperm.xlu0 %634, %v299
        %v636 = vpop.permute.xlu0 %635
        %638 = vset.pattern.permute.xlu0 1
        %639 = vperm.xlu0 %638, %v300
        %v640 = vpop.permute.xlu0 %639
        %642 = vset.pattern.permute.xlu0 1
        %643 = vperm.xlu0 %642, %v301
        %v644 = vpop.permute.xlu0 %643
        %646 = vset.pattern.permute.xlu0 1
        %647 = vperm.xlu0 %646, %v302
        %v648 = vpop.permute.xlu0 %647
        %650 = vset.pattern.permute.xlu0 1
        %651 = vperm.xlu0 %650, %v303
        %v652 = vpop.permute.xlu0 %651
        %654 = vset.pattern.permute.xlu0 1
        %655 = vperm.xlu0 %654, %v304
        %v656 = vpop.permute.xlu0 %655
        %658 = vset.pattern.permute.xlu0 1
        %659 = vperm.xlu0 %658, %v305
        %v660 = vpop.permute.xlu0 %659
        %662 = vset.pattern.permute.xlu0 1
        %663 = vperm.xlu0 %662, %v306
        %v664 = vpop.permute.xlu0 %663
        %666 = vset.pattern.permute.xlu0 1
        %667 = vperm.xlu0 %666, %v307
        %v668 = vpop.permute.xlu0 %667
        %670 = vset.pattern.permute.xlu0 1
        %671 = vperm.xlu0 %670, %v308
        %v672 = vpop.permute.xlu0 %671
        %674 = vset.pattern.permute.xlu0 1
        %675 = vperm.xlu0 %674, %v309
        %v676 = vpop.permute.xlu0 %675
        %678 = vset.pattern.permute.xlu0 1
        %679 = vperm.xlu0 %678, %v310
        %v680 = vpop.permute.xlu0 %679
        %v682 = vsel %vm586, %v620, 0.0
        %v683 = vsel %vm587, %v620, 0.0
        %v684 = vsel %vm588, %v624, 0.0
        %v685 = vsel %vm589, %v624, 0.0
        %v686 = vsel %vm590, %v628, 0.0
        %v687 = vsel %vm591, %v628, 0.0
        %v688 = vsel %vm592, %v632, 0.0
        %v689 = vsel %vm593, %v632, 0.0
        %v690 = vsel %vm594, %v636, 0.0
        %v691 = vsel %vm595, %v636, 0.0
        %v692 = vsel %vm596, %v640, 0.0
        %v693 = vsel %vm597, %v640, 0.0
        %v694 = vsel %vm598, %v644, 0.0
        %v695 = vsel %vm599, %v644, 0.0
        %v696 = vsel %vm600, %v648, 0.0
        %v697 = vsel %vm601, %v648, 0.0
        %v698 = vsel %vm602, %v652, 0.0
        %v699 = vsel %vm603, %v652, 0.0
        %v700 = vsel %vm604, %v656, 0.0
        %v701 = vsel %vm605, %v656, 0.0
        %v702 = vsel %vm606, %v660, 0.0
        %v703 = vsel %vm607, %v660, 0.0
        %v704 = vsel %vm608, %v664, 0.0
        %v705 = vsel %vm609, %v664, 0.0
        %v706 = vsel %vm610, %v668, 0.0
        %v707 = vsel %vm611, %v668, 0.0
        %v708 = vsel %vm612, %v672, 0.0
        %v709 = vsel %vm613, %v672, 0.0
        %v710 = vsel %vm614, %v676, 0.0
        %v711 = vsel %vm615, %v676, 0.0
        %v712 = vsel %vm616, %v680, 0.0
        %v713 = vsel %vm617, %v680, 0.0
        %v714 = vadd.f32 %v506, %v682
        %v715 = vadd.f32 %v507, %v683
        %v716 = vadd.f32 %v508, %v684
        %v717 = vadd.f32 %v509, %v685
        %v718 = vadd.f32 %v510, %v686
        %v719 = vadd.f32 %v511, %v687
        %v720 = vadd.f32 %v512, %v688
        %v721 = vadd.f32 %v513, %v689
        %v722 = vadd.f32 %v514, %v690
        %v723 = vadd.f32 %v515, %v691
        %v724 = vadd.f32 %v516, %v692
        %v725 = vadd.f32 %v517, %v693
        %v726 = vadd.f32 %v518, %v694
        %v727 = vadd.f32 %v519, %v695
        %v728 = vadd.f32 %v520, %v696
        %v729 = vadd.f32 %v521, %v697
        %v730 = vadd.f32 %v522, %v698
        %v731 = vadd.f32 %v523, %v699
        %v732 = vadd.f32 %v524, %v700
        %v733 = vadd.f32 %v525, %v701
        %v734 = vadd.f32 %v526, %v702
        %v735 = vadd.f32 %v527, %v703
        %v736 = vadd.f32 %v528, %v704
        %v737 = vadd.f32 %v529, %v705
        %v738 = vadd.f32 %v530, %v706
        %v739 = vadd.f32 %v531, %v707
        %v740 = vadd.f32 %v532, %v708
        %v741 = vadd.f32 %v533, %v709
        %v742 = vadd.f32 %v534, %v710
        %v743 = vadd.f32 %v535, %v711
        %v744 = vadd.f32 %v536, %v712
        %v745 = vadd.f32 %v537, %v713
        %746 = vset.pattern.permute.xlu0 2
        %747 = vperm.xlu0 %746, %v279
        %v748 = vpop.permute.xlu0 %747
        %749 = vset.pattern.permute.xlu0 2
        %750 = vperm.xlu0 %749, %v280
        %v751 = vpop.permute.xlu0 %750
        %752 = vset.pattern.permute.xlu0 2
        %753 = vperm.xlu0 %752, %v281
        %v754 = vpop.permute.xlu0 %753
        %755 = vset.pattern.permute.xlu0 2
        %756 = vperm.xlu0 %755, %v282
        %v757 = vpop.permute.xlu0 %756
        %758 = vset.pattern.permute.xlu0 2
        %759 = vperm.xlu0 %758, %v283
        %v760 = vpop.permute.xlu0 %759
        %761 = vset.pattern.permute.xlu0 2
        %762 = vperm.xlu0 %761, %v284
        %v763 = vpop.permute.xlu0 %762
        %764 = vset.pattern.permute.xlu0 2
        %765 = vperm.xlu0 %764, %v285
        %v766 = vpop.permute.xlu0 %765
        %767 = vset.pattern.permute.xlu0 2
        %768 = vperm.xlu0 %767, %v286
        %v769 = vpop.permute.xlu0 %768
        %770 = vset.pattern.permute.xlu0 2
        %771 = vperm.xlu0 %770, %v287
        %v772 = vpop.permute.xlu0 %771
        %773 = vset.pattern.permute.xlu0 2
        %774 = vperm.xlu0 %773, %v288
        %v775 = vpop.permute.xlu0 %774
        %776 = vset.pattern.permute.xlu0 2
        %777 = vperm.xlu0 %776, %v289
        %v778 = vpop.permute.xlu0 %777
        %779 = vset.pattern.permute.xlu0 2
        %780 = vperm.xlu0 %779, %v290
        %v781 = vpop.permute.xlu0 %780
        %782 = vset.pattern.permute.xlu0 2
        %783 = vperm.xlu0 %782, %v291
        %v784 = vpop.permute.xlu0 %783
        %785 = vset.pattern.permute.xlu0 2
        %786 = vperm.xlu0 %785, %v292
        %v787 = vpop.permute.xlu0 %786
        %788 = vset.pattern.permute.xlu0 2
        %789 = vperm.xlu0 %788, %v293
        %v790 = vpop.permute.xlu0 %789
        %791 = vset.pattern.permute.xlu0 2
        %792 = vperm.xlu0 %791, %v294
        %v793 = vpop.permute.xlu0 %792
        %vm794 = vcmp.eq.s32.totalorder %v312, %v748
        %vm795 = vcmp.eq.s32.totalorder %v313, %v748
        %vm796 = vcmp.eq.s32.totalorder %v312, %v751
        %vm797 = vcmp.eq.s32.totalorder %v313, %v751
        %vm798 = vcmp.eq.s32.totalorder %v312, %v754
        %vm799 = vcmp.eq.s32.totalorder %v313, %v754
        %vm800 = vcmp.eq.s32.totalorder %v312, %v757
        %vm801 = vcmp.eq.s32.totalorder %v313, %v757
        %vm802 = vcmp.eq.s32.totalorder %v312, %v760
        %vm803 = vcmp.eq.s32.totalorder %v313, %v760
        %vm804 = vcmp.eq.s32.totalorder %v312, %v763
        %vm805 = vcmp.eq.s32.totalorder %v313, %v763
        %vm806 = vcmp.eq.s32.totalorder %v312, %v766
        %vm807 = vcmp.eq.s32.totalorder %v313, %v766
        %vm808 = vcmp.eq.s32.totalorder %v312, %v769
        %vm809 = vcmp.eq.s32.totalorder %v313, %v769
        %vm810 = vcmp.eq.s32.totalorder %v312, %v772
        %vm811 = vcmp.eq.s32.totalorder %v313, %v772
        %vm812 = vcmp.eq.s32.totalorder %v312, %v775
        %vm813 = vcmp.eq.s32.totalorder %v313, %v775
        %vm814 = vcmp.eq.s32.totalorder %v312, %v778
        %vm815 = vcmp.eq.s32.totalorder %v313, %v778
        %vm816 = vcmp.eq.s32.totalorder %v312, %v781
        %vm817 = vcmp.eq.s32.totalorder %v313, %v781
        %vm818 = vcmp.eq.s32.totalorder %v312, %v784
        %vm819 = vcmp.eq.s32.totalorder %v313, %v784
        %vm820 = vcmp.eq.s32.totalorder %v312, %v787
        %vm821 = vcmp.eq.s32.totalorder %v313, %v787
        %vm822 = vcmp.eq.s32.totalorder %v312, %v790
        %vm823 = vcmp.eq.s32.totalorder %v313, %v790
        %vm824 = vcmp.eq.s32.totalorder %v312, %v793
        %vm825 = vcmp.eq.s32.totalorder %v313, %v793
        %826 = vset.pattern.permute.xlu0 2
        %827 = vperm.xlu0 %826, %v295
        %v828 = vpop.permute.xlu0 %827
        %830 = vset.pattern.permute.xlu0 2
        %831 = vperm.xlu0 %830, %v296
        %v832 = vpop.permute.xlu0 %831
        %834 = vset.pattern.permute.xlu0 2
        %835 = vperm.xlu0 %834, %v297
        %v836 = vpop.permute.xlu0 %835
        %838 = vset.pattern.permute.xlu0 2
        %839 = vperm.xlu0 %838, %v298
        %v840 = vpop.permute.xlu0 %839
        %842 = vset.pattern.permute.xlu0 2
        %843 = vperm.xlu0 %842, %v299
        %v844 = vpop.permute.xlu0 %843
        %846 = vset.pattern.permute.xlu0 2
        %847 = vperm.xlu0 %846, %v300
        %v848 = vpop.permute.xlu0 %847
        %850 = vset.pattern.permute.xlu0 2
        %851 = vperm.xlu0 %850, %v301
        %v852 = vpop.permute.xlu0 %851
        %854 = vset.pattern.permute.xlu0 2
        %855 = vperm.xlu0 %854, %v302
        %v856 = vpop.permute.xlu0 %855
        %858 = vset.pattern.permute.xlu0 2
        %859 = vperm.xlu0 %858, %v303
        %v860 = vpop.permute.xlu0 %859
        %862 = vset.pattern.permute.xlu0 2
        %863 = vperm.xlu0 %862, %v304
        %v864 = vpop.permute.xlu0 %863
        %866 = vset.pattern.permute.xlu0 2
        %867 = vperm.xlu0 %866, %v305
        %v868 = vpop.permute.xlu0 %867
        %870 = vset.pattern.permute.xlu0 2
        %871 = vperm.xlu0 %870, %v306
        %v872 = vpop.permute.xlu0 %871
        %874 = vset.pattern.permute.xlu0 2
        %875 = vperm.xlu0 %874, %v307
        %v876 = vpop.permute.xlu0 %875
        %878 = vset.pattern.permute.xlu0 2
        %879 = vperm.xlu0 %878, %v308
        %v880 = vpop.permute.xlu0 %879
        %882 = vset.pattern.permute.xlu0 2
        %883 = vperm.xlu0 %882, %v309
        %v884 = vpop.permute.xlu0 %883
        %886 = vset.pattern.permute.xlu0 2
        %887 = vperm.xlu0 %886, %v310
        %v888 = vpop.permute.xlu0 %887
        %v890 = vsel %vm794, %v828, 0.0
        %v891 = vsel %vm795, %v828, 0.0
        %v892 = vsel %vm796, %v832, 0.0
        %v893 = vsel %vm797, %v832, 0.0
        %v894 = vsel %vm798, %v836, 0.0
        %v895 = vsel %vm799, %v836, 0.0
        %v896 = vsel %vm800, %v840, 0.0
        %v897 = vsel %vm801, %v840, 0.0
        %v898 = vsel %vm802, %v844, 0.0
        %v899 = vsel %vm803, %v844, 0.0
        %v900 = vsel %vm804, %v848, 0.0
        %v901 = vsel %vm805, %v848, 0.0
        %v902 = vsel %vm806, %v852, 0.0
        %v903 = vsel %vm807, %v852, 0.0
        %v904 = vsel %vm808, %v856, 0.0
        %v905 = vsel %vm809, %v856, 0.0
        %v906 = vsel %vm810, %v860, 0.0
        %v907 = vsel %vm811, %v860, 0.0
        %v908 = vsel %vm812, %v864, 0.0
        %v909 = vsel %vm813, %v864, 0.0
        %v910 = vsel %vm814, %v868, 0.0
        %v911 = vsel %vm815, %v868, 0.0
        %v912 = vsel %vm816, %v872, 0.0
        %v913 = vsel %vm817, %v872, 0.0
        %v914 = vsel %vm818, %v876, 0.0
        %v915 = vsel %vm819, %v876, 0.0
        %v916 = vsel %vm820, %v880, 0.0
        %v917 = vsel %vm821, %v880, 0.0
        %v918 = vsel %vm822, %v884, 0.0
        %v919 = vsel %vm823, %v884, 0.0
        %v920 = vsel %vm824, %v888, 0.0
        %v921 = vsel %vm825, %v888, 0.0
        %v922 = vadd.f32 %v714, %v890
        %v923 = vadd.f32 %v715, %v891
        %v924 = vadd.f32 %v716, %v892
        %v925 = vadd.f32 %v717, %v893
        %v926 = vadd.f32 %v718, %v894
        %v927 = vadd.f32 %v719, %v895
        %v928 = vadd.f32 %v720, %v896
        %v929 = vadd.f32 %v721, %v897
        %v930 = vadd.f32 %v722, %v898
        %v931 = vadd.f32 %v723, %v899
        %v932 = vadd.f32 %v724, %v900
        %v933 = vadd.f32 %v725, %v901
        %v934 = vadd.f32 %v726, %v902
        %v935 = vadd.f32 %v727, %v903
        %v936 = vadd.f32 %v728, %v904
        %v937 = vadd.f32 %v729, %v905
        %v938 = vadd.f32 %v730, %v906
        %v939 = vadd.f32 %v731, %v907
        %v940 = vadd.f32 %v732, %v908
        %v941 = vadd.f32 %v733, %v909
        %v942 = vadd.f32 %v734, %v910
        %v943 = vadd.f32 %v735, %v911
        %v944 = vadd.f32 %v736, %v912
        %v945 = vadd.f32 %v737, %v913
        %v946 = vadd.f32 %v738, %v914
        %v947 = vadd.f32 %v739, %v915
        %v948 = vadd.f32 %v740, %v916
        %v949 = vadd.f32 %v741, %v917
        %v950 = vadd.f32 %v742, %v918
        %v951 = vadd.f32 %v743, %v919
        %v952 = vadd.f32 %v744, %v920
        %v953 = vadd.f32 %v745, %v921
        %s954 = scalar_lea.vmem [#allocation2], %s199
        %v955 = vld [vmem:[%s954] sm:$0xff]
        %v956 = vld [vmem:[%s954 + $0x8] sm:$0xff]
        %v957 = vld [vmem:[%s954 + $0x10] sm:$0xff]
        %v958 = vld [vmem:[%s954 + $0x18] sm:$0xff]
        %v959 = vld [vmem:[%s954 + $0x20] sm:$0xff]
        %v960 = vld [vmem:[%s954 + $0x28] sm:$0xff]
        %v961 = vld [vmem:[%s954 + $0x30] sm:$0xff]
        %v962 = vld [vmem:[%s954 + $0x38] sm:$0xff]
        %v963 = vld [vmem:[%s954 + $0x40] sm:$0xff]
        %v964 = vld [vmem:[%s954 + $0x48] sm:$0xff]
        %v965 = vld [vmem:[%s954 + $0x50] sm:$0xff]
        %v966 = vld [vmem:[%s954 + $0x58] sm:$0xff]
        %v967 = vld [vmem:[%s954 + $0x60] sm:$0xff]
        %v968 = vld [vmem:[%s954 + $0x68] sm:$0xff]
        %v969 = vld [vmem:[%s954 + $0x70] sm:$0xff]
        %v970 = vld [vmem:[%s954 + $0x78] sm:$0xff]
        %v971 = vld [vmem:[%s954 + $0x80] sm:$0xff]
        %v972 = vld [vmem:[%s954 + $0x88] sm:$0xff]
        %v973 = vld [vmem:[%s954 + $0x90] sm:$0xff]
        %v974 = vld [vmem:[%s954 + $0x98] sm:$0xff]
        %v975 = vld [vmem:[%s954 + $0xa0] sm:$0xff]
        %v976 = vld [vmem:[%s954 + $0xa8] sm:$0xff]
        %v977 = vld [vmem:[%s954 + $0xb0] sm:$0xff]
        %v978 = vld [vmem:[%s954 + $0xb8] sm:$0xff]
        %v979 = vld [vmem:[%s954 + $0xc0] sm:$0xff]
        %v980 = vld [vmem:[%s954 + $0xc8] sm:$0xff]
        %v981 = vld [vmem:[%s954 + $0xd0] sm:$0xff]
        %v982 = vld [vmem:[%s954 + $0xd8] sm:$0xff]
        %v983 = vld [vmem:[%s954 + $0xe0] sm:$0xff]
        %v984 = vld [vmem:[%s954 + $0xe8] sm:$0xff]
        %v985 = vld [vmem:[%s954 + $0xf0] sm:$0xff]
        %v986 = vld [vmem:[%s954 + $0xf8] sm:$0xff]
        %987 = vmatpush.msra.mxu0 %v970
        %988 = vmatpush.msra.mxu0 %v969
        %989 = vmatpush.msra.mxu0 %v968
        %990 = vmatpush.msra.mxu0 %v967
        %991 = vmatpush.msra.mxu0 %v966
        %992 = vmatpush.msra.mxu0 %v965
        %993 = vmatpush.msra.mxu0 %v964
        %994 = vmatpush.msra.mxu0 %v963
        %995 = vmatpush.msra.mxu0 %v962
        %996 = vmatpush.msra.mxu0 %v961
        %997 = vmatpush.msra.mxu0 %v960
        %998 = vmatpush.msra.mxu0 %v959
        %999 = vmatpush.msra.mxu0 %v958
        %1000 = vmatpush.msra.mxu0 %v957
        %1001 = vmatpush.msra.mxu0 %v956
        %1002 = vmatpush.msra.mxu0 %v955
        %1003 = vmatmul.f32.gmra.mxu0 %v922
        %v1004 = vpop.f32.mrf.mxu0
        %v1005 = vadd.f32 0.0, %v1004
        %1006 = vmatmul.f32.gmra.mxu0 %v924
        %v1007 = vpop.f32.mrf.mxu0
        %v1008 = vadd.f32 0.0, %v1007
        %1009 = vmatmul.f32.gmra.mxu0 %v926
        %v1010 = vpop.f32.mrf.mxu0
        %v1011 = vadd.f32 0.0, %v1010
        %1012 = vmatmul.f32.gmra.mxu0 %v928
        %v1013 = vpop.f32.mrf.mxu0
        %v1014 = vadd.f32 0.0, %v1013
        %1015 = vmatmul.f32.gmra.mxu0 %v930
        %v1016 = vpop.f32.mrf.mxu0
        %v1017 = vadd.f32 0.0, %v1016
        %1018 = vmatmul.f32.gmra.mxu0 %v932
        %v1019 = vpop.f32.mrf.mxu0
        %v1020 = vadd.f32 0.0, %v1019
        %1021 = vmatmul.f32.gmra.mxu0 %v934
        %v1022 = vpop.f32.mrf.mxu0
        %v1023 = vadd.f32 0.0, %v1022
        %1024 = vmatmul.f32.gmra.mxu0 %v936
        %v1025 = vpop.f32.mrf.mxu0
        %v1026 = vadd.f32 0.0, %v1025
        %1027 = vmatmul.f32.gmra.mxu0 %v938
        %v1028 = vpop.f32.mrf.mxu0
        %v1029 = vadd.f32 0.0, %v1028
        %1030 = vmatmul.f32.gmra.mxu0 %v940
        %v1031 = vpop.f32.mrf.mxu0
        %v1032 = vadd.f32 0.0, %v1031
        %1033 = vmatmul.f32.gmra.mxu0 %v942
        %v1034 = vpop.f32.mrf.mxu0
        %v1035 = vadd.f32 0.0, %v1034
        %1036 = vmatmul.f32.gmra.mxu0 %v944
        %v1037 = vpop.f32.mrf.mxu0
        %v1038 = vadd.f32 0.0, %v1037
        %1039 = vmatmul.f32.gmra.mxu0 %v946
        %v1040 = vpop.f32.mrf.mxu0
        %v1041 = vadd.f32 0.0, %v1040
        %1042 = vmatmul.f32.gmra.mxu0 %v948
        %v1043 = vpop.f32.mrf.mxu0
        %v1044 = vadd.f32 0.0, %v1043
        %1045 = vmatmul.f32.gmra.mxu0 %v950
        %v1046 = vpop.f32.mrf.mxu0
        %v1047 = vadd.f32 0.0, %v1046
        %1048 = vmatmul.f32.gmra.mxu0 %v952
        %v1049 = vpop.f32.mrf.mxu0
        %v1050 = vadd.f32 0.0, %v1049
        %1051 = vdwg.mxu0
        %1052 = vmatpush.msra.mxu0 %v986
        %1053 = vmatpush.msra.mxu0 %v985
        %1054 = vmatpush.msra.mxu0 %v984
        %1055 = vmatpush.msra.mxu0 %v983
        %1056 = vmatpush.msra.mxu0 %v982
        %1057 = vmatpush.msra.mxu0 %v981
        %1058 = vmatpush.msra.mxu0 %v980
        %1059 = vmatpush.msra.mxu0 %v979
        %1060 = vmatpush.msra.mxu0 %v978
        %1061 = vmatpush.msra.mxu0 %v977
        %1062 = vmatpush.msra.mxu0 %v976
        %1063 = vmatpush.msra.mxu0 %v975
        %1064 = vmatpush.msra.mxu0 %v974
        %1065 = vmatpush.msra.mxu0 %v973
        %1066 = vmatpush.msra.mxu0 %v972
        %1067 = vmatpush.msra.mxu0 %v971
        %1068 = vmatmul.f32.gmra.mxu0 %v923
        %v1069 = vpop.f32.mrf.mxu0
        %v1070 = vadd.f32 %v1005, %v1069
        %1071 = vmatmul.f32.gmra.mxu0 %v925
        %v1072 = vpop.f32.mrf.mxu0
        %v1073 = vadd.f32 %v1008, %v1072
        %1074 = vmatmul.f32.gmra.mxu0 %v927
        %v1075 = vpop.f32.mrf.mxu0
        %v1076 = vadd.f32 %v1011, %v1075
        %1077 = vmatmul.f32.gmra.mxu0 %v929
        %v1078 = vpop.f32.mrf.mxu0
        %v1079 = vadd.f32 %v1014, %v1078
        %1080 = vmatmul.f32.gmra.mxu0 %v931
        %v1081 = vpop.f32.mrf.mxu0
        %v1082 = vadd.f32 %v1017, %v1081
        %1083 = vmatmul.f32.gmra.mxu0 %v933
        %v1084 = vpop.f32.mrf.mxu0
        %v1085 = vadd.f32 %v1020, %v1084
        %1086 = vmatmul.f32.gmra.mxu0 %v935
        %v1087 = vpop.f32.mrf.mxu0
        %v1088 = vadd.f32 %v1023, %v1087
        %1089 = vmatmul.f32.gmra.mxu0 %v937
        %v1090 = vpop.f32.mrf.mxu0
        %v1091 = vadd.f32 %v1026, %v1090
        %1092 = vmatmul.f32.gmra.mxu0 %v939
        %v1093 = vpop.f32.mrf.mxu0
        %v1094 = vadd.f32 %v1029, %v1093
        %1095 = vmatmul.f32.gmra.mxu0 %v941
        %v1096 = vpop.f32.mrf.mxu0
        %v1097 = vadd.f32 %v1032, %v1096
        %1098 = vmatmul.f32.gmra.mxu0 %v943
        %v1099 = vpop.f32.mrf.mxu0
        %v1100 = vadd.f32 %v1035, %v1099
        %1101 = vmatmul.f32.gmra.mxu0 %v945
        %v1102 = vpop.f32.mrf.mxu0
        %v1103 = vadd.f32 %v1038, %v1102
        %1104 = vmatmul.f32.gmra.mxu0 %v947
        %v1105 = vpop.f32.mrf.mxu0
        %v1106 = vadd.f32 %v1041, %v1105
        %1107 = vmatmul.f32.gmra.mxu0 %v949
        %v1108 = vpop.f32.mrf.mxu0
        %v1109 = vadd.f32 %v1044, %v1108
        %1110 = vmatmul.f32.gmra.mxu0 %v951
        %v1111 = vpop.f32.mrf.mxu0
        %v1112 = vadd.f32 %v1047, %v1111
        %1113 = vmatmul.f32.gmra.mxu0 %v953
        %v1114 = vpop.f32.mrf.mxu0
        %v1115 = vadd.f32 %v1050, %v1114
        %1116 = vdwg.mxu0
        %s1117 = sadd.s32 %s207, %s208
        %s1118 = scalar_lea.vmem [#allocation2], %s1117
        %1119 = vst [vmem:[%s1118] sm:$0xff] %v1070
        %1120 = vst [vmem:[%s1118 + $0x8] sm:$0xff] %v1073
        %1121 = vst [vmem:[%s1118 + $0x10] sm:$0xff] %v1076
        %1122 = vst [vmem:[%s1118 + $0x18] sm:$0xff] %v1079
        %1123 = vst [vmem:[%s1118 + $0x20] sm:$0xff] %v1082
        %1124 = vst [vmem:[%s1118 + $0x28] sm:$0xff] %v1085
        %1125 = vst [vmem:[%s1118 + $0x30] sm:$0xff] %v1088
        %1126 = vst [vmem:[%s1118 + $0x38] sm:$0xff] %v1091
        %1127 = vst [vmem:[%s1118 + $0x40] sm:$0xff] %v1094
        %1128 = vst [vmem:[%s1118 + $0x48] sm:$0xff] %v1097
        %1129 = vst [vmem:[%s1118 + $0x50] sm:$0xff] %v1100
        %1130 = vst [vmem:[%s1118 + $0x58] sm:$0xff] %v1103
        %1131 = vst [vmem:[%s1118 + $0x60] sm:$0xff] %v1106
        %1132 = vst [vmem:[%s1118 + $0x68] sm:$0xff] %v1109
        %1133 = vst [vmem:[%s1118 + $0x70] sm:$0xff] %v1112
        %1134 = vst [vmem:[%s1118 + $0x78] sm:$0xff] %v1115
        %p1135 = scmp.eq.s32.totalorder %s19, 1
        // Predicated region
        $region37: #{tpu_custom_call.1} parent=31 // pred_check
          %p1136 = pneg %p1135
        $region38: #{tpu_custom_call.1} parent=31 // pred_check_branch
          %1138 = sbr.rel (%p1136) target = $region40
        $region39: #{tpu_custom_call.1} parent=31 // pred_region
          %s1139 = scalar_lea.vmem [#allocation3], %s208
          %1140 = vst [vmem:[%s1139] sm:$0xff] %v1070
          %1141 = vst [vmem:[%s1139 + $0x8] sm:$0xff] %v1073
          %1142 = vst [vmem:[%s1139 + $0x10] sm:$0xff] %v1076
          %1143 = vst [vmem:[%s1139 + $0x18] sm:$0xff] %v1079
          %1144 = vst [vmem:[%s1139 + $0x20] sm:$0xff] %v1082
          %1145 = vst [vmem:[%s1139 + $0x28] sm:$0xff] %v1085
          %1146 = vst [vmem:[%s1139 + $0x30] sm:$0xff] %v1088
          %1147 = vst [vmem:[%s1139 + $0x38] sm:$0xff] %v1091
          %1148 = vst [vmem:[%s1139 + $0x40] sm:$0xff] %v1094
          %1149 = vst [vmem:[%s1139 + $0x48] sm:$0xff] %v1097
          %1150 = vst [vmem:[%s1139 + $0x50] sm:$0xff] %v1100
          %1151 = vst [vmem:[%s1139 + $0x58] sm:$0xff] %v1103
          %1152 = vst [vmem:[%s1139 + $0x60] sm:$0xff] %v1106
          %1153 = vst [vmem:[%s1139 + $0x68] sm:$0xff] %v1109
          %1154 = vst [vmem:[%s1139 + $0x70] sm:$0xff] %v1112
          %1155 = vst [vmem:[%s1139 + $0x78] sm:$0xff] %v1115
        $region40: #{tpu_custom_call.1} parent=31 // pred_fallthru
          _
        // Predicated region
        $region41: #{tpu_custom_call.1} parent=31 // pred_check
          %p1156 = pneg %p113
        $region42: #{tpu_custom_call.1} parent=31 // pred_check_branch
          %1158 = sbr.rel (%p1156) target = $region44
        $region43: #{tpu_custom_call.1} parent=31 // pred_region
          %1160 = vsyncadd [#allocation4], 0
          %s1161 = sshll.u32 [#allocation3], 4
          %s1162 = int_to_ptr.vmem [resolvable:$true] %s1161
          %s1163 = sshll.u32 %s3, 4
          %s1164 = int_to_ptr.hbm [resolvable:$true] %s1163
          %1169 = dma.vmem_to_hbm [thread:$0]  %s1162, 4096, %s1164, [#allocation4], 128, 128, 8
        $region44: #{tpu_custom_call.1} parent=31 // pred_fallthru
          _
        // Predicated region
        $region45: #{tpu_custom_call.1} parent=31 // pred_check
          %p1170 = pneg %p113
        $region46: #{tpu_custom_call.1} parent=31 // pred_check_branch
          %1172 = sbr.rel (%p1170) target = $region48
        $region47: #{tpu_custom_call.1} parent=31 // pred_region
          %1174 = dma.done [#allocation4], 4096
        $region48: #{tpu_custom_call.1} parent=31 // pred_fallthru
          _
      $region32: #{tpu_custom_call.1} parent=5 // pred_fallthru
        _
      %p1175 = scmp.le.s32.totalorder 2, %s10
      // Predicated region
      $region49: #{tpu_custom_call.1} parent=5 // pred_check
        %p1176 = pneg %p1175
      $region50: #{tpu_custom_call.1} parent=5 // pred_check_branch
        %1178 = sbr.rel (%p1176) target = $region52
      $region51: #{tpu_custom_call.1} parent=5 // pred_region
        %s1179 = ssub.s32 %s10, 2
      $region52: #{tpu_custom_call.1} parent=5 // pred_fallthru
        _
    $region6: #{tpu_custom_call.1} parent=1 // loop_footer
      %s14 = sadd.s32 1, %s10
    $region7: #{tpu_custom_call.1} parent=1 // loop_footer_branch
      %9 = sbr.rel target = $region3
    $region8: #{tpu_custom_call.1} parent=1 // loop_exit
      _
    %1180 = vsyncpa [#allocation4], 1
    %s1181 = scalar_lea.sflag [#allocation4], 1
    %1182 = vsyncpa %s1181, 1

</llo_original>
